<compile_context>
chip_gen: v6e
topology: v6e:2x2x1
jax: 0.10.0
libtpu: 0.0.40
codegen_flags: <defaults>
</compile_context>

<pallas_src>
import functools

import jax
import jax.numpy as jnp
from jax.experimental import pallas as pl
from jax.experimental.pallas import tpu as pltpu


def _mcc_kernel(x_ref, w_ref, b_ref, o_ref, *, K, T):
    # x_ref: (1, dt, T + K - 1)  padded series tile (time on lanes)
    # w_ref: (K, S, 1)           conv weight, (PyTorch weight is (S, 1, K))
    # b_ref: (S, 1)              conv bias
    # o_ref: (1, dt, S, T)       output tile, time on lanes (lane-dense store)
    xp = x_ref[0].astype(jnp.float32)        # (dt, T_pad), lane axis = time
    w = w_ref[...].astype(jnp.float32)       # (K, S, 1)
    b = b_ref[...].astype(jnp.float32)       # (S, 1)

    dt = xp.shape[0]
    S = w.shape[1]

    # acc[d, s, t] = bias[s] + sum_k w[k, s] * x_pad[d, t + k]
    # Bias enters via a broadcast (no explicit zeros pass); accumulation in f32.
    acc = jnp.broadcast_to(b[None, :, :], (dt, S, T))
    for k in range(K):                       # K is tiny & static -> unrolled
        # Static lane-shifted slice of the padded series (XLU rotate, cheap).
        xk = xp[:, k:k + T]                  # (dt, T), lane-dense
        acc = acc + xk[:, None, :] * w[k][None, :, :]

    # Lane-dense store: last dim of the block is T, not S.
    o_ref[...] = acc[None].astype(o_ref.dtype)

    # NOTE: for num_shapelets >= ~128 an im2col + jnp.dot (MXU) formulation
    # would be preferable; for typical small K/S the VPU MAC path is right.


def _pick_d_block(D, S, T, itemsize_out, budget_bytes):
    """Largest divisor of D that is legal as a block dim (==D or %8==0) and
    keeps the f32 accumulator + output tile within the VMEM budget."""
    best = None
    for c in range(1, D + 1):
        if D % c:
            continue
        if c != D and c % 8:
            continue  # second-minor block dim must be %8 or the full dim
        # f32 accumulator + (double-buffered) output tile for this dt.
        tile_bytes = c * S * T * (4 + 2 * itemsize_out)
        if tile_bytes <= budget_bytes:
            best = c
    if best is None:  # nothing under budget: take the smallest legal tile
        legal = [c for c in range(1, D + 1)
                 if D % c == 0 and (c == D or c % 8 == 0)]
        best = min(legal)
    return best


def max_cross_correlation_block(x, weight, bias, shapelets_size, *,
                                out_dtype=None,
                                vmem_budget_bytes=8 * 1024 * 1024):
    """Forward pass of MaxCrossCorrelationBlock (in_channels=1, masking=False).

    x:      (B, D, T) float32
    weight: (S, 1, K) float32  (same shape as PyTorch Conv1d weight)
    bias:   (S,)      float32
    returns (B, D, T, S) in out_dtype (defaults to x.dtype / f32)
    """
    B, D, T = x.shape
    K = shapelets_size
    S = weight.shape[0]
    assert weight.shape == (S, 1, K)
    out_dtype = x.dtype if out_dtype is None else out_dtype

    pad_l = (K - 1) // 2
    pad_r = pad_l + (K - 1) % 2
    T_pad = T + K - 1
    x_pad = jnp.pad(x, ((0, 0), (0, 0), (pad_l, pad_r)))        # (B, D, T_pad)

    # Weight as (K, S, 1) and bias as (S, 1): tiny, broadcast-friendly layouts.
    w3 = jnp.transpose(weight, (2, 0, 1)).astype(jnp.float32)   # (K, S, 1)
    b2 = bias.reshape(S, 1).astype(jnp.float32)

    dt = _pick_d_block(D, S, T, jnp.dtype(out_dtype).itemsize, vmem_budget_bytes)

    kernel = functools.partial(_mcc_kernel, K=K, T=T)

    grid = (B, D // dt)
    out_sdt = pl.pallas_call(
        kernel,
        # Kernel-native layout: (B, D, S, T) so stores are lane-dense over T.
        out_shape=jax.ShapeDtypeStruct((B, D, S, T), out_dtype),
        grid=grid,
        in_specs=[
            pl.BlockSpec((1, dt, T_pad), lambda b, d: (b, d, 0)),
            pl.BlockSpec((K, S, 1), lambda b, d: (0, 0, 0)),
            pl.BlockSpec((S, 1), lambda b, d: (0, 0)),
        ],
        out_specs=pl.BlockSpec((1, dt, S, T), lambda b, d: (b, d, 0, 0)),
        compiler_params=pltpu.CompilerParams(
            # Both axes are independent -> shard across TensorCores (v7x has 2).
            dimension_semantics=("parallel", "parallel"),
            # Explicit, generation-safe VMEM ceiling (<= v7x's 64 MiB physical);
            # tiles are sized well below it by _pick_d_block.
            vmem_limit_bytes=32 * 1024 * 1024,
        ),
    )(x_pad, w3, b2)

    # (B, D, S, T) -> (B, D, T, S): single cheap XLA transpose back to the
    # PyTorch module's output layout.
    return jnp.transpose(out_sdt, (0, 1, 3, 2))

    # TODO(synk): in_channels > 1 path (plain multi-channel Conv1d) and the
    # optional binomial masking branch are not implemented here.


def _reference(x, weight, bias, K):
    # Pure-JAX reference of the same math (im2col), for correctness check.
    B, D, T = x.shape
    S = weight.shape[0]
    pad_l = (K - 1) // 2
    pad_r = pad_l + (K - 1) % 2
    x_pad = jnp.pad(x, ((0, 0), (0, 0), (pad_l, pad_r)))
    cols = jnp.stack([x_pad[:, :, k:k + T] for k in range(K)], axis=-1)  # (B,D,T,K)
    w = weight[:, 0, :]                                                  # (S, K)
    return jnp.einsum("bdtk,sk->bdts", cols, w) + bias[None, None, None, :]


if __name__ == "__main__":
    # Small shapes consistent with the module: batch=2, dim(vars)=4, time=16,
    # shapelets_size=5, num_shapelets=8, in_channels=1.
    B, D, T = 2, 4, 16
    K, S = 5, 8

    key = jax.random.PRNGKey(0)
    kx, kw, kb = jax.random.split(key, 3)

    x = jax.random.normal(kx, (B, D, T), dtype=jnp.float32)
    # Deterministic Conv1d-style init: U(-1/sqrt(fan_in), 1/sqrt(fan_in))
    bound = 1.0 / (1 * K) ** 0.5
    weight = jax.random.uniform(kw, (S, 1, K), jnp.float32, -bound, bound)
    bias = jax.random.uniform(kb, (S,), jnp.float32, -bound, bound)

    out = max_cross_correlation_block(x, weight, bias, K)
    out = jax.block_until_ready(out)

    ref = _reference(x, weight, bias, K)
    assert out.shape == (B, D, T, S), out.shape
    assert jnp.allclose(out, ref, atol=1e-5, rtol=1e-5), "mismatch vs reference"

    print("KERNEL_OK")
</pallas_src>

<mosaic_0001>
module attributes {stable_mosaic.version = 11 : i64} {
  func.func @_mcc_kernel(%arg0: i32, %arg1: i32, %arg2: memref<1x4x20xf32, #tpu.memory_space<vmem>>, %arg3: memref<5x8x1xf32, #tpu.memory_space<vmem>>, %arg4: memref<8x1xf32, #tpu.memory_space<vmem>>, %arg5: memref<1x4x8x16xf32, #tpu.memory_space<vmem>>) attributes {dimension_semantics = [#tpu.dimension_semantics<parallel>, #tpu.dimension_semantics<parallel>], iteration_bounds = array<i64: 2, 1>, scalar_prefetch = 0 : i64, scratch_operands = 0 : i64, tpu.core_type = #tpu.core_type<tc>, window_params = [{transform_indices = @transform_0, window_bounds = array<i64: 1, 4, 20>}, {pipeline_mode = #tpu.pipeline_mode<synchronous>, transform_indices = @transform_1, window_bounds = array<i64: 5, 8, 1>}, {pipeline_mode = #tpu.pipeline_mode<synchronous>, transform_indices = @transform_2, window_bounds = array<i64: 8, 1>}, {transform_indices = @transform_3, window_bounds = array<i64: 1, 4, 8, 16>}]} {
    %c0 = arith.constant 0 : index
    %c0_0 = arith.constant 0 : index
    %c0_1 = arith.constant 0 : index
    %0 = vector.load %arg2[%c0, %c0_0, %c0_1] : memref<1x4x20xf32, #tpu.memory_space<vmem>>, vector<1x4x20xf32>
    %1 = vector.shape_cast %0 : vector<1x4x20xf32> to vector<4x20xf32>
    %c0_2 = arith.constant 0 : index
    %c0_3 = arith.constant 0 : index
    %c0_4 = arith.constant 0 : index
    %2 = vector.load %arg3[%c0_2, %c0_3, %c0_4] : memref<5x8x1xf32, #tpu.memory_space<vmem>>, vector<5x8x1xf32>
    %c0_5 = arith.constant 0 : index
    %c0_6 = arith.constant 0 : index
    %3 = vector.load %arg4[%c0_5, %c0_6] : memref<8x1xf32, #tpu.memory_space<vmem>>, vector<8x1xf32>
    %4 = vector.shape_cast %3 : vector<8x1xf32> to vector<1x8x1xf32>
    %5 = vector.shape_cast %4 : vector<1x8x1xf32> to vector<1x8x1xf32>
    %6 = vector.broadcast %5 : vector<1x8x1xf32> to vector<4x8x16xf32>
    %7 = vector.extract_strided_slice %1 {offsets = [0, 0], sizes = [4, 16], strides = [1, 1]} : vector<4x20xf32> to vector<4x16xf32>
    %8 = vector.shape_cast %7 : vector<4x16xf32> to vector<4x1x16xf32>
    %9 = vector.extract_strided_slice %2 {offsets = [0, 0, 0], sizes = [1, 8, 1], strides = [1, 1, 1]} : vector<5x8x1xf32> to vector<1x8x1xf32>
    %10 = vector.shape_cast %9 : vector<1x8x1xf32> to vector<8x1xf32>
    %11 = vector.shape_cast %10 : vector<8x1xf32> to vector<1x8x1xf32>
    %12 = vector.broadcast %8 : vector<4x1x16xf32> to vector<4x8x16xf32>
    %13 = vector.broadcast %11 : vector<1x8x1xf32> to vector<4x8x16xf32>
    %14 = arith.mulf %12, %13 : vector<4x8x16xf32>
    %15 = arith.addf %6, %14 : vector<4x8x16xf32>
    %16 = vector.extract_strided_slice %1 {offsets = [0, 1], sizes = [4, 16], strides = [1, 1]} : vector<4x20xf32> to vector<4x16xf32>
    %17 = vector.shape_cast %16 : vector<4x16xf32> to vector<4x1x16xf32>
    %18 = vector.extract_strided_slice %2 {offsets = [1, 0, 0], sizes = [1, 8, 1], strides = [1, 1, 1]} : vector<5x8x1xf32> to vector<1x8x1xf32>
    %19 = vector.shape_cast %18 : vector<1x8x1xf32> to vector<8x1xf32>
    %20 = vector.shape_cast %19 : vector<8x1xf32> to vector<1x8x1xf32>
    %21 = vector.broadcast %17 : vector<4x1x16xf32> to vector<4x8x16xf32>
    %22 = vector.broadcast %20 : vector<1x8x1xf32> to vector<4x8x16xf32>
    %23 = arith.mulf %21, %22 : vector<4x8x16xf32>
    %24 = arith.addf %15, %23 : vector<4x8x16xf32>
    %25 = vector.extract_strided_slice %1 {offsets = [0, 2], sizes = [4, 16], strides = [1, 1]} : vector<4x20xf32> to vector<4x16xf32>
    %26 = vector.shape_cast %25 : vector<4x16xf32> to vector<4x1x16xf32>
    %27 = vector.extract_strided_slice %2 {offsets = [2, 0, 0], sizes = [1, 8, 1], strides = [1, 1, 1]} : vector<5x8x1xf32> to vector<1x8x1xf32>
    %28 = vector.shape_cast %27 : vector<1x8x1xf32> to vector<8x1xf32>
    %29 = vector.shape_cast %28 : vector<8x1xf32> to vector<1x8x1xf32>
    %30 = vector.broadcast %26 : vector<4x1x16xf32> to vector<4x8x16xf32>
    %31 = vector.broadcast %29 : vector<1x8x1xf32> to vector<4x8x16xf32>
    %32 = arith.mulf %30, %31 : vector<4x8x16xf32>
    %33 = arith.addf %24, %32 : vector<4x8x16xf32>
    %34 = vector.extract_strided_slice %1 {offsets = [0, 3], sizes = [4, 16], strides = [1, 1]} : vector<4x20xf32> to vector<4x16xf32>
    %35 = vector.shape_cast %34 : vector<4x16xf32> to vector<4x1x16xf32>
    %36 = vector.extract_strided_slice %2 {offsets = [3, 0, 0], sizes = [1, 8, 1], strides = [1, 1, 1]} : vector<5x8x1xf32> to vector<1x8x1xf32>
    %37 = vector.shape_cast %36 : vector<1x8x1xf32> to vector<8x1xf32>
    %38 = vector.shape_cast %37 : vector<8x1xf32> to vector<1x8x1xf32>
    %39 = vector.broadcast %35 : vector<4x1x16xf32> to vector<4x8x16xf32>
    %40 = vector.broadcast %38 : vector<1x8x1xf32> to vector<4x8x16xf32>
    %41 = arith.mulf %39, %40 : vector<4x8x16xf32>
    %42 = arith.addf %33, %41 : vector<4x8x16xf32>
    %43 = vector.extract_strided_slice %1 {offsets = [0, 4], sizes = [4, 16], strides = [1, 1]} : vector<4x20xf32> to vector<4x16xf32>
    %44 = vector.shape_cast %43 : vector<4x16xf32> to vector<4x1x16xf32>
    %45 = vector.extract_strided_slice %2 {offsets = [4, 0, 0], sizes = [1, 8, 1], strides = [1, 1, 1]} : vector<5x8x1xf32> to vector<1x8x1xf32>
    %46 = vector.shape_cast %45 : vector<1x8x1xf32> to vector<8x1xf32>
    %47 = vector.shape_cast %46 : vector<8x1xf32> to vector<1x8x1xf32>
    %48 = vector.broadcast %44 : vector<4x1x16xf32> to vector<4x8x16xf32>
    %49 = vector.broadcast %47 : vector<1x8x1xf32> to vector<4x8x16xf32>
    %50 = arith.mulf %48, %49 : vector<4x8x16xf32>
    %51 = arith.addf %42, %50 : vector<4x8x16xf32>
    %52 = vector.shape_cast %51 : vector<4x8x16xf32> to vector<1x4x8x16xf32>
    %c0_7 = arith.constant 0 : index
    %c0_8 = arith.constant 0 : index
    %c0_9 = arith.constant 0 : index
    %c0_10 = arith.constant 0 : index
    %53 = vector.load %arg5[%c0_7, %c0_8, %c0_9, %c0_10] : memref<1x4x8x16xf32, #tpu.memory_space<vmem>>, vector<1x4x8x16xf32>
    tpu.vector_store %arg5[%c0_7, %c0_8, %c0_9, %c0_10], %52 {strides = array<i32>} : memref<1x4x8x16xf32, #tpu.memory_space<vmem>>, vector<1x4x8x16xf32>,
    return
  }
  func.func @transform_0(%arg0: i32, %arg1: i32) -> (i32, i32, i32) {
    %c0_i32 = arith.constant 0 : i32
    %c0_i32_0 = arith.constant 0 : i32
    return %arg0, %arg1, %c0_i32 : i32, i32, i32
  }
  func.func @transform_1(%arg0: i32, %arg1: i32) -> (i32, i32, i32) {
    %c0_i32 = arith.constant 0 : i32
    %c0_i32_0 = arith.constant 0 : i32
    %c0_i32_1 = arith.constant 0 : i32
    %c0_i32_2 = arith.constant 0 : i32
    return %c0_i32, %c0_i32_0, %c0_i32_1 : i32, i32, i32
  }
  func.func @transform_2(%arg0: i32, %arg1: i32) -> (i32, i32) {
    %c0_i32 = arith.constant 0 : i32
    %c0_i32_0 = arith.constant 0 : i32
    %c0_i32_1 = arith.constant 0 : i32
    return %c0_i32, %c0_i32_0 : i32, i32
  }
  func.func @transform_3(%arg0: i32, %arg1: i32) -> (i32, i32, i32, i32) {
    %c0_i32 = arith.constant 0 : i32
    %c0_i32_0 = arith.constant 0 : i32
    %c0_i32_1 = arith.constant 0 : i32
    return %arg0, %arg1, %c0_i32, %c0_i32_0 : i32, i32, i32, i32
  }
}

</mosaic_0001>

<llo_original>
// kernel: tpu_custom_call.1
$region0: #{tpu_custom_call.1}
  #allocation0 [shape = 'u32[]', space=smem, size = 0x4, offset = 0x4, fixed_abs, tag = 'smem constant byte address 0x4 - core index']
  #allocation1 [shape = 'u32[144,128]{1,0:T(1,128)}', space=vmem, size = 0x12000, scoped, tag = 'internal scratch']
  %s0 = inlined_call_operand.vmem [shape: f32[2,4,20], index: 0, kind: input, shape index: {}]
  %s1 = inlined_call_operand.vmem [shape: f32[5,8,1], index: 1, kind: input, shape index: {}]
  %s2 = inlined_call_operand.vmem [shape: f32[8,1], index: 2, kind: input, shape index: {}]
  %s3 = inlined_call_operand.hbm [shape: f32[2,4,8,16], index: 3, kind: output, shape index: {}]
  %s4 = sld [smem:[#allocation0]]
  $region45: #{tpu_custom_call.1} parent=0
    _
  %s6 = ssub.s32 1, %s4
  %s7 = scalar_select 0, %s6, %s4
  $region1: #{tpu_custom_call.1} parent=0
    #allocation2 [shape = 'u8[32768]{0}', space=vmem, size = 0x8000, scoped, tag = 'output window, operand 0']
    #allocation3 [shape = 's32[2]{0}', space=sflag, size = 0x8, scoped, tag = 'scoped memory for tpu_custom_call.1']
    %8 = vsyncpa [#allocation3], 0
    %s9 = scalar_lea.sflag [#allocation3], 1
    %10 = vsyncpa %s9, 0
    loop: start=0, step=1, limit=4
    $region2: #{tpu_custom_call.1} parent=1 // loop_pre_header
      _
    $region3: #{tpu_custom_call.1} parent=1 // loop_header
      %s12 = sphi 0, %s16
      %p13 = scmp.ge.s32.totalorder %s12, 4
      %s19 = sphi 0, %s31
      %s20 = sphi 0, %s27
      %s21 = sphi 0, %s19
      %s22 = sphi 0, %s20
      %s23 = sphi 0, %s21
      %s24 = sphi 0, %s22
      %s36 = sphi 0, %s38
      %s39 = sphi 0, %s36
      %s40 = sphi 0, %s39
      %s56 = sphi 0, %s40
      %s60 = sphi 0, %s60
      %s62 = sphi 0, %s60
      %s63 = sphi 0, %s62
      %s77 = sphi 0, %s63
      %s81 = sphi 0, %s81
      %s83 = sphi 0, %s81
      %s84 = sphi 0, %s83
      %s98 = sphi 0, %s84
      %s106 = sphi 0, %s108
      %s109 = sphi 0, %s106
      %s110 = sphi 0, %s109
      %s126 = sphi 0, %s110
    $region4: #{tpu_custom_call.1} parent=1 // loop_header_branch
      %15 = sbr.rel (%p13) target = $region8
    $region5: #{tpu_custom_call.1} parent=1 // loop_body
      %s17 = ssub.s32 %s12, 1
      %s18 = ssub.s32 %s12, 2
      %s25 = sadd.s32 1, %s20
      %p26 = scmp.ge.s32.totalorder %s25, 1
      %s27 = scalar_select %p26, 0, %s25
      %s28 = sadd.s32 1, %s19
      %s29 = scalar_select %p26, %s28, %s19
      %p30 = scmp.ge.s32.totalorder %s29, 2
      %s31 = scalar_select %p30, 0, %s29
      %s32 = ssub.s32 %s19, %s31
      %s33 = ssub.s32 %s20, %s27
      %s34 = sor.u32 %s32, %s33
      %p35 = scmp.eq.s32.totalorder %s34, 0
      %s37 = sadd.s32 %s36, 1
      %s38 = scalar_select %p35, %s36, %s37
      %p41 = pneg %p35
      %p42 = scmp.eq.s32.totalorder %s12, 1
      %p43 = por %p41, %p42
      %p44 = scmp.ne.s32.totalorder %s36, %s39
      %p45 = scmp.eq.s32.totalorder %s12, 0
      %p46 = por %p44, %p45
      %p47 = scmp.ne.s32.totalorder %s36, %s39
      %p48 = scmp.eq.s32.totalorder %s17, 1
      %p49 = por %p47, %p48
      %p50 = scmp.ne.s32.totalorder %s39, %s40
      %p51 = scmp.eq.s32.totalorder %s17, 0
      %p52 = por %p50, %p51
      %p53 = scmp.ne.s32.totalorder %s39, %s40
      %p54 = scmp.eq.s32.totalorder %s18, 1
      %p55 = por %p53, %p54
      %p57 = scmp.ne.s32.totalorder %s40, %s56
      %p58 = scmp.eq.s32.totalorder %s18, 0
      %p59 = por %p57, %p58
      %s61 = sadd.s32 %s60, 1
      %p64 = scmp.eq.s32.totalorder %s12, 1
      %p65 = scmp.ne.s32.totalorder %s60, %s62
      %p66 = scmp.eq.s32.totalorder %s12, 0
      %p67 = por %p65, %p66
      %p68 = scmp.ne.s32.totalorder %s60, %s62
      %p69 = scmp.eq.s32.totalorder %s17, 1
      %p70 = por %p68, %p69
      %p71 = scmp.ne.s32.totalorder %s62, %s63
      %p72 = scmp.eq.s32.totalorder %s17, 0
      %p73 = por %p71, %p72
      %p74 = scmp.ne.s32.totalorder %s62, %s63
      %p75 = scmp.eq.s32.totalorder %s18, 1
      %p76 = por %p74, %p75
      %p78 = scmp.ne.s32.totalorder %s63, %s77
      %p79 = scmp.eq.s32.totalorder %s18, 0
      %p80 = por %p78, %p79
      %s82 = sadd.s32 %s81, 1
      %p85 = scmp.eq.s32.totalorder %s12, 1
      %p86 = scmp.ne.s32.totalorder %s81, %s83
      %p87 = scmp.eq.s32.totalorder %s12, 0
      %p88 = por %p86, %p87
      %p89 = scmp.ne.s32.totalorder %s81, %s83
      %p90 = scmp.eq.s32.totalorder %s17, 1
      %p91 = por %p89, %p90
      %p92 = scmp.ne.s32.totalorder %s83, %s84
      %p93 = scmp.eq.s32.totalorder %s17, 0
      %p94 = por %p92, %p93
      %p95 = scmp.ne.s32.totalorder %s83, %s84
      %p96 = scmp.eq.s32.totalorder %s18, 1
      %p97 = por %p95, %p96
      %p99 = scmp.ne.s32.totalorder %s84, %s98
      %p100 = scmp.eq.s32.totalorder %s18, 0
      %p101 = por %p99, %p100
      %s102 = ssub.s32 %s19, %s31
      %s103 = ssub.s32 %s20, %s27
      %s104 = sor.u32 %s102, %s103
      %p105 = scmp.eq.s32.totalorder %s104, 0
      %s107 = sadd.s32 %s106, 1
      %s108 = scalar_select %p105, %s106, %s107
      %p111 = pneg %p105
      %p112 = scmp.eq.s32.totalorder %s12, 1
      %p113 = por %p111, %p112
      %p114 = scmp.ne.s32.totalorder %s106, %s109
      %p115 = scmp.eq.s32.totalorder %s12, 0
      %p116 = por %p114, %p115
      %p117 = scmp.ne.s32.totalorder %s106, %s109
      %p118 = scmp.eq.s32.totalorder %s17, 1
      %p119 = por %p117, %p118
      %p120 = scmp.ne.s32.totalorder %s109, %s110
      %p121 = scmp.eq.s32.totalorder %s17, 0
      %p122 = por %p120, %p121
      %p123 = scmp.ne.s32.totalorder %s109, %s110
      %p124 = scmp.eq.s32.totalorder %s18, 1
      %p125 = por %p123, %p124
      %p127 = scmp.ne.s32.totalorder %s110, %s126
      %p128 = scmp.eq.s32.totalorder %s18, 0
      %p129 = por %p127, %p128
      %p130 = scmp.le.s32.totalorder 1, %s12
      %p131 = scmp.lt.s32.totalorder %s12, 3
      %p132 = pnand %p130, %p131
      %p133 = pneg %p132
      // Predicated region
      $region9: #{tpu_custom_call.1} parent=5 // pred_check
        _
      $region10: #{tpu_custom_call.1} parent=5 // pred_check_branch
        %135 = sbr.rel (%p132) target = $region12
      $region11: #{tpu_custom_call.1} parent=5 // pred_region
        %s136 = ssub.s32 %s12, 1
        // Predicated region
        $region13: #{tpu_custom_call.1} parent=11 // pred_check
          %p137 = pneg %p73
        $region14: #{tpu_custom_call.1} parent=11 // pred_check_branch
          %139 = sbr.rel (%p137) target = $region16
        $region15: #{tpu_custom_call.1} parent=11 // pred_region
          _
        $region16: #{tpu_custom_call.1} parent=11 // pred_fallthru
          _
        // Predicated region
        $region17: #{tpu_custom_call.1} parent=11 // pred_check
          %p140 = pneg %p94
        $region18: #{tpu_custom_call.1} parent=11 // pred_check_branch
          %142 = sbr.rel (%p140) target = $region20
        $region19: #{tpu_custom_call.1} parent=11 // pred_region
          _
        $region20: #{tpu_custom_call.1} parent=11 // pred_fallthru
          _
      $region12: #{tpu_custom_call.1} parent=5 // pred_fallthru
        _
      %p143 = scmp.lt.s32.totalorder %s12, 2
      // Predicated region
      $region21: #{tpu_custom_call.1} parent=5 // pred_check
        %p144 = pneg %p143
      $region22: #{tpu_custom_call.1} parent=5 // pred_check_branch
        %146 = sbr.rel (%p144) target = $region24
      $region23: #{tpu_custom_call.1} parent=5 // pred_region
        // Predicated region
        $region25: #{tpu_custom_call.1} parent=23 // pred_check
          %p147 = pneg %p46
        $region26: #{tpu_custom_call.1} parent=23 // pred_check_branch
          %149 = sbr.rel (%p147) target = $region28
        $region27: #{tpu_custom_call.1} parent=23 // pred_region
          %p150 = scmp.lt.s32.totalorder %s19, 1
          %s151 = scalar_select %p150, %s19, 1
          %p152 = scmp.lt.s32.totalorder %s20, 0
          %s153 = scalar_select %p152, %s20, 0
          %s154 = sadd.s32 %s153, %s151
          %s155 = smul.addr %s154, 4
          %s156 = scalar_lea.vmem %s0, %s155
        $region28: #{tpu_custom_call.1} parent=23 // pred_fallthru
          _
      $region24: #{tpu_custom_call.1} parent=5 // pred_fallthru
        _
      %p157 = scmp.le.s32.totalorder 1, %s12
      %p158 = scmp.lt.s32.totalorder %s12, 3
      %p159 = pnand %p157, %p158
      %p160 = pneg %p159
      // Predicated region
      $region29: #{tpu_custom_call.1} parent=5 // pred_check
        _
      $region30: #{tpu_custom_call.1} parent=5 // pred_check_branch
        %162 = sbr.rel (%p159) target = $region32
      $region31: #{tpu_custom_call.1} parent=5 // pred_region
        %s163 = ssub.s32 %s12, 1
        %p164 = scmp.lt.s32.totalorder %s21, 1
        %s165 = scalar_select %p164, %s21, 1
        %p166 = scmp.lt.s32.totalorder %s22, 0
        %s167 = scalar_select %p166, %s22, 0
        %s168 = sadd.s32 %s167, %s165
        %s169 = smul.addr %s168, 4
        %s170 = scalar_lea.vmem %s0, %s169
        %p171 = pneg %p52
        %p172 = pneg %p49
        %p173 = pneg %p73
        %p174 = pneg %p70
        %p175 = pneg %p94
        %p176 = pneg %p91
        %p177 = pneg %p122
        %p178 = pneg %p119
        %s179 = sand.u32 %s109, 1
        %s180 = scalar_lea.sflag [#allocation3], %s179
        %s181 = sand.u32 %s109, 1
        %s182 = smul.addr %s181, 32
        %s183 = scalar_lea.vmem [#allocation2], %s182
        %p184 = scmp.lt.s32.totalorder %s21, 1
        %s185 = scalar_select %p184, %s21, 1
        %p186 = scmp.lt.s32.totalorder %s22, 0
        %s187 = scalar_select %p186, %s22, 0
        %s188 = sadd.s32 %s187, %s185
        %s189 = smul.addr %s188, 4
        %s190 = scalar_lea.vmem %s0, %s189
        %s191 = smul.u32 4, %s22
        %v192 = vld [vmem:[%s190] sm:$0xf]
        %v193 = vld [vmem:[%s1] sm:$0xff]
        %v194 = vld [vmem:[%s1 + $0x8] sm:$0xff]
        %v195 = vld [vmem:[%s1 + $0x10] sm:$0xff]
        %v196 = vld [vmem:[%s1 + $0x18] sm:$0xff]
        %v197 = vld [vmem:[%s1 + $0x20] sm:$0xff]
        %v198 = vld [vmem:[%s2] sm:$0xff]
        %200 = vset.pattern.permute.xlu0 0
        %201 = vperm.xlu0 %200, %v198
        %v202 = vpop.permute.xlu0 %201
        %v206 = vunpack.c.l.s4 1966171168
        %v207 = vunpack.c.0.s8 %v206
        %v208 = vlaneseq
        %v209 = vshrl.u32 %v208, 7
        %v210 = vsub.s32 %v207, %v209
        %v211 = vrot.slane %v192, %v210
        %v212 = vcombine.high %v211, %v211
        %v214 = vunpack.c.l.s4 1966171168
        %v215 = vunpack.c.0.s8 %v214
        %v216 = vlaneseq
        %v217 = vshrl.u32 %v216, 7
        %v218 = vsub.s32 %v215, %v217
        %v219 = vrot.slane %v211, %v218
        %v221 = vunpack.c.l.s4 1966171168
        %v222 = vunpack.c.0.s8 %v221
        %v223 = vlaneseq
        %v224 = vshrl.u32 %v223, 7
        %v225 = vsub.s32 %v222, %v224
        %v226 = vrot.slane %v212, %v225
        %v227 = vcombine.high %v219, %v219
        %v228 = vcombine.high %v226, %v226
        %v229 = vlaneseq
        %v230 = vshrl.u32 %v229, 7
        %v231 = vsub.s32 0, %v230
        %v232 = vrot.slane %v219, %v231
        %v233 = vlaneseq
        %v234 = vshrl.u32 %v233, 7
        %v235 = vsub.s32 0, %v234
        %v236 = vrot.slane %v226, %v235
        %v237 = vlaneseq
        %v238 = vshrl.u32 %v237, 7
        %v239 = vsub.s32 0, %v238
        %v240 = vrot.slane %v227, %v239
        %v241 = vlaneseq
        %v242 = vshrl.u32 %v241, 7
        %v243 = vsub.s32 0, %v242
        %v244 = vrot.slane %v228, %v243
        %250 = vset.pattern.permute.xlu0 0
        %251 = vperm.xlu0 %250, %v193
        %v252 = vpop.permute.xlu0 %251
        %v254 = vmul.f32 %v232, %v252
        %v255 = vmul.f32 %v236, %v252
        %v256 = vmul.f32 %v240, %v252
        %v257 = vmul.f32 %v244, %v252
        %v258 = vadd.f32 %v202, %v254
        %v259 = vadd.f32 %v202, %v255
        %v260 = vadd.f32 %v202, %v256
        %v261 = vadd.f32 %v202, %v257
        %263 = vset.pattern.permute.xlu0 0
        %264 = vperm.xlu0 %263, %v194
        %v265 = vpop.permute.xlu0 %264
        %v267 = vmul.f32 %v232, %v265
        %v268 = vmul.f32 %v236, %v265
        %v269 = vmul.f32 %v240, %v265
        %v270 = vmul.f32 %v244, %v265
        %275 = vrot.lane.b32.xlu0 %v267, 127
        %v276 = vpop.permute.xlu0 %275
        %277 = vrot.lane.b32.xlu0 %v268, 127
        %v278 = vpop.permute.xlu0 %277
        %279 = vrot.lane.b32.xlu0 %v269, 127
        %v280 = vpop.permute.xlu0 %279
        %281 = vrot.lane.b32.xlu0 %v270, 127
        %v282 = vpop.permute.xlu0 %281
        %v287 = vadd.f32 %v258, %v276
        %v288 = vadd.f32 %v259, %v278
        %v289 = vadd.f32 %v260, %v280
        %v290 = vadd.f32 %v261, %v282
        %292 = vset.pattern.permute.xlu0 0
        %293 = vperm.xlu0 %292, %v195
        %v294 = vpop.permute.xlu0 %293
        %v296 = vmul.f32 %v232, %v294
        %v297 = vmul.f32 %v236, %v294
        %v298 = vmul.f32 %v240, %v294
        %v299 = vmul.f32 %v244, %v294
        %304 = vrot.lane.b32.xlu0 %v296, 126
        %v305 = vpop.permute.xlu0 %304
        %306 = vrot.lane.b32.xlu0 %v297, 126
        %v307 = vpop.permute.xlu0 %306
        %308 = vrot.lane.b32.xlu0 %v298, 126
        %v309 = vpop.permute.xlu0 %308
        %310 = vrot.lane.b32.xlu0 %v299, 126
        %v311 = vpop.permute.xlu0 %310
        %v316 = vadd.f32 %v287, %v305
        %v317 = vadd.f32 %v288, %v307
        %v318 = vadd.f32 %v289, %v309
        %v319 = vadd.f32 %v290, %v311
        %321 = vset.pattern.permute.xlu0 0
        %322 = vperm.xlu0 %321, %v196
        %v323 = vpop.permute.xlu0 %322
        %v325 = vmul.f32 %v232, %v323
        %v326 = vmul.f32 %v236, %v323
        %v327 = vmul.f32 %v240, %v323
        %v328 = vmul.f32 %v244, %v323
        %333 = vrot.lane.b32.xlu0 %v325, 125
        %v334 = vpop.permute.xlu0 %333
        %335 = vrot.lane.b32.xlu0 %v326, 125
        %v336 = vpop.permute.xlu0 %335
        %337 = vrot.lane.b32.xlu0 %v327, 125
        %v338 = vpop.permute.xlu0 %337
        %339 = vrot.lane.b32.xlu0 %v328, 125
        %v340 = vpop.permute.xlu0 %339
        %v345 = vadd.f32 %v316, %v334
        %v346 = vadd.f32 %v317, %v336
        %v347 = vadd.f32 %v318, %v338
        %v348 = vadd.f32 %v319, %v340
        %350 = vset.pattern.permute.xlu0 0
        %351 = vperm.xlu0 %350, %v197
        %v352 = vpop.permute.xlu0 %351
        %v354 = vmul.f32 %v232, %v352
        %v355 = vmul.f32 %v236, %v352
        %v356 = vmul.f32 %v240, %v352
        %v357 = vmul.f32 %v244, %v352
        %362 = vrot.lane.b32.xlu0 %v354, 124
        %v363 = vpop.permute.xlu0 %362
        %364 = vrot.lane.b32.xlu0 %v355, 124
        %v365 = vpop.permute.xlu0 %364
        %366 = vrot.lane.b32.xlu0 %v356, 124
        %v367 = vpop.permute.xlu0 %366
        %368 = vrot.lane.b32.xlu0 %v357, 124
        %v369 = vpop.permute.xlu0 %368
        %v374 = vadd.f32 %v345, %v363
        %v375 = vadd.f32 %v346, %v365
        %v376 = vadd.f32 %v347, %v367
        %v377 = vadd.f32 %v348, %v369
        %vm378 = vcmask 130048
        %379 = vst.msk [vmem:[%s183] sm:$0xff] %vm378, %v374
        %380 = vst.msk [vmem:[%s183 + $0x8] sm:$0xff] %vm378, %v375
        %381 = vst.msk [vmem:[%s183 + $0x10] sm:$0xff] %vm378, %v376
        %382 = vst.msk [vmem:[%s183 + $0x18] sm:$0xff] %vm378, %v377
        %s383 = sand.u32 %s109, 1
        %s384 = scalar_lea.sflag [#allocation3], %s383
        %s385 = sand.u32 %s109, 1
        %s386 = smul.addr %s385, 32
        %s387 = scalar_lea.vmem [#allocation2], %s386
        // Predicated region
        $region33: #{tpu_custom_call.1} parent=31 // pred_check
          %p388 = pneg %p119
        $region34: #{tpu_custom_call.1} parent=31 // pred_check_branch
          %390 = sbr.rel (%p388) target = $region36
        $region35: #{tpu_custom_call.1} parent=31 // pred_region
          %s391 = smul.u32 4, %s22
          %s393 = ssub.s32 512, 512
          %394 = vsyncadd %s384, %s393
          %s395 = smul.addr %s21, 4
          %s396 = sadd.s32 %s391, %s395
          %s397 = smul.addr %s396, 128
          %s398 = scalar_lea.hbm %s3, %s397
          %s399 = sshll.u32 %s387, 4
          %s400 = int_to_ptr.vmem [resolvable:$true] %s399
          %405 = dma.vmem_to_hbm [thread:$0]  %s400, 512, %s398, %s384, 128, 128, 8
        $region36: #{tpu_custom_call.1} parent=31 // pred_fallthru
          _
      $region32: #{tpu_custom_call.1} parent=5 // pred_fallthru
        _
      %p406 = scmp.le.s32.totalorder 2, %s12
      // Predicated region
      $region37: #{tpu_custom_call.1} parent=5 // pred_check
        %p407 = pneg %p406
      $region38: #{tpu_custom_call.1} parent=5 // pred_check_branch
        %409 = sbr.rel (%p407) target = $region40
      $region39: #{tpu_custom_call.1} parent=5 // pred_region
        %s410 = ssub.s32 %s12, 2
        // Predicated region
        $region41: #{tpu_custom_call.1} parent=39 // pred_check
          %p411 = pneg %p125
        $region42: #{tpu_custom_call.1} parent=39 // pred_check_branch
          %413 = sbr.rel (%p411) target = $region44
        $region43: #{tpu_custom_call.1} parent=39 // pred_region
          %s414 = sand.u32 %s110, 1
          %s415 = scalar_lea.sflag [#allocation3], %s414
          %s416 = sand.u32 %s110, 1
          %s417 = smul.addr %s416, 32
          %s418 = scalar_lea.vmem [#allocation2], %s417
          %419 = dma.done %s415, 512
        $region44: #{tpu_custom_call.1} parent=39 // pred_fallthru
          _
      $region40: #{tpu_custom_call.1} parent=5 // pred_fallthru
        _
    $region6: #{tpu_custom_call.1} parent=1 // loop_footer
      %s16 = sadd.s32 1, %s12
    $region7: #{tpu_custom_call.1} parent=1 // loop_footer_branch
      %11 = sbr.rel target = $region3
    $region8: #{tpu_custom_call.1} parent=1 // loop_exit
      _
    %420 = vsyncpa [#allocation3], 1
    %s421 = scalar_lea.sflag [#allocation3], 1
    %422 = vsyncpa %s421, 1

</llo_original>
